<compile_context>
chip_gen: v7x
topology: tpu7x:2x2x1
jax: 0.10.0
libtpu: 0.0.40
codegen_flags: <defaults>
</compile_context>

<pallas_src>
import functools

import jax
import jax.numpy as jnp
from jax.experimental import pallas as pl
from jax.experimental.pallas import tpu as pltpu

OUT_DIM = 80
OUT_PAD = 128  # lane-dense padded output width


def _round_up(x, m):
    return ((x + m - 1) // m) * m


def _tpu_vmem_capacity():
    try:
        info = pltpu.get_tpu_info()
        cap = getattr(info, "vmem_capacity_bytes", None)
        if cap:
            return int(cap)
    except Exception:
        pass
    return 64 << 20  # conservative fallback: v7x per-TensorCore VMEM


def _choose_tiles(B, D):
    """Pick (TB, TK) batch/K tiles from D and the chip's VMEM capacity."""
    budget = int(_tpu_vmem_capacity() * 0.7)  # leave headroom for the compiler

    def tile_bytes(tb, tk):
        return (2 * tb * tk * 4          # x: f32 in VMEM, double-buffered
                + 2 * tk * OUT_PAD * 2   # W: bf16, (double-buffered when K-split)
                + 2 * tb * OUT_PAD * 4   # out: f32, resident + writeback buffer
                + 2 * OUT_PAD * 4)       # bias

    # Batch tile: large for small D (amortize ~0.35us/grid-step), smaller for
    # huge D; force >=2 batch blocks for big batches so v7x megacore shards.
    if D <= 2048:
        tb_cap = 4096
    elif D <= 8192:
        tb_cap = 1024
    else:
        tb_cap = 512
    if B >= 1024:
        tb_cap = min(tb_cap, _round_up(pl.cdiv(B, 2), 16))
    tb = min(tb_cap, _round_up(B, 16))
    if tb >= B:
        tb = B  # single block covering the whole batch exactly (no partial block)

    # K tile: full-D strip if it fits the VMEM budget, else split (multiple of 128).
    tk = D
    if tile_bytes(tb, tk) > budget:
        tk = _round_up(max(128, _round_up(D, 128) // 2), 128)
        while tk > 128 and tile_bytes(tb, tk) > budget:
            tk = _round_up(tk // 2, 128)
        while tb > 16 and tile_bytes(tb, tk) > budget:
            tb = max(16, _round_up(tb // 2, 16))
    return tb, tk


def gatenet_kernel(x_ref, w_ref, b_ref, o_ref, *, d_total, tk, mask_k):
    # x_ref: (TB, TK) f32 | w_ref: (TK, OUT_PAD) bf16
    # b_ref: (1, OUT_PAD) f32 | o_ref: (TB, OUT_PAD) f32 (resident across k)
    k = pl.program_id(1)

    @pl.when(k == 0)
    def _init():
        o_ref[...] = jnp.zeros(o_ref.shape, o_ref.dtype)

    x = x_ref[...]
    w = w_ref[...]
    if mask_k:
        # Last K block is partial: zero out-of-range K columns/rows so OOB
        # garbage never reaches the accumulator (cheap VPU selects).
        valid = d_total - k * tk
        col = jax.lax.broadcasted_iota(jnp.int32, x.shape, dimension=1)
        x = jnp.where(col < valid, x, 0.0)
        row = jax.lax.broadcasted_iota(jnp.int32, w.shape, dimension=0)
        w = jnp.where(row < valid, w, jnp.zeros_like(w))

    # bf16 cast happens in-register (x travels HBM->VMEM once, as f32).
    o_ref[...] += jnp.dot(x.astype(jnp.bfloat16), w,
                          preferred_element_type=jnp.float32)

    @pl.when(k == pl.num_programs(1) - 1)
    def _finalize():
        logits = o_ref[...] + b_ref[...]   # padded lanes get -1e30 -> exp ~ 0
        m = jnp.max(logits, axis=-1, keepdims=True)
        e = jnp.exp(logits - m)
        denom = jnp.sum(e, axis=-1, keepdims=True)
        # Exact divide: rows sum to 1 to f32 precision (EUP/VPU is not the
        # bottleneck; the kernel is HBM-bound on the x stream).
        o_ref[...] = e / denom


def prepare_params(w_t, b):
    """One-time prep: (D, 80) f32 weight + (80,) f32 bias -> padded kernel params."""
    D, O = w_t.shape
    assert O == OUT_DIM
    w_pad = jnp.zeros((D, OUT_PAD), jnp.bfloat16).at[:, :O].set(
        w_t.astype(jnp.bfloat16))
    # Bias pad stays f32 (-1e30 would overflow bf16).
    b_pad = jnp.full((1, OUT_PAD), -1e30, jnp.float32).at[0, :O].set(
        b.astype(jnp.float32))
    return w_pad, b_pad


def gatenet_forward(x, w_pad, b_pad, *, slice_output=True):
    """x: (B, D) float. w_pad/b_pad from prepare_params. Returns softmax probs."""
    B, D = x.shape
    assert w_pad.shape == (D, OUT_PAD)
    assert b_pad.shape == (1, OUT_PAD)

    TB, TK = _choose_tiles(B, D)
    num_b = pl.cdiv(B, TB)
    num_k = pl.cdiv(D, TK)
    mask_k = (D % TK) != 0  # only possible when the K axis is split

    kernel = functools.partial(gatenet_kernel, d_total=D, tk=TK, mask_k=mask_k)

    # VMEM limit derived from the actual tiles, capped below physical capacity.
    vmem_bytes = (2 * TB * TK * 4) + (2 * TK * OUT_PAD * 2) \
        + (2 * TB * OUT_PAD * 4) + (2 * OUT_PAD * 4) + (2 << 20)
    vmem_bytes = int(min(max(vmem_bytes, 4 << 20),
                         int(_tpu_vmem_capacity() * 0.9)))

    cost = pl.CostEstimate(
        flops=2 * B * D * OUT_PAD,
        transcendentals=B * OUT_PAD,
        bytes_accessed=B * D * 4 + D * OUT_PAD * 2 + B * OUT_PAD * 4 + OUT_PAD * 4,
    )

    out = pl.pallas_call(
        kernel,
        out_shape=jax.ShapeDtypeStruct((B, OUT_PAD), jnp.float32),
        grid=(num_b, num_k),
        in_specs=[
            pl.BlockSpec((TB, TK), lambda i, k: (i, k)),        # x: batch x K tiles
            pl.BlockSpec((TK, OUT_PAD), lambda i, k: (k, 0)),   # W: K tiles (resident when num_k==1)
            pl.BlockSpec((1, OUT_PAD), lambda i, k: (0, 0)),    # bias: resident
        ],
        out_specs=pl.BlockSpec((TB, OUT_PAD), lambda i, k: (i, 0)),
        compiler_params=pltpu.CompilerParams(
            dimension_semantics=("parallel", "arbitrary"),
            vmem_limit_bytes=vmem_bytes,
        ),
        cost_estimate=cost,
    )(x, w_pad, b_pad)

    # Padded lanes are exactly 0 (zero W columns + -1e30 bias), so callers that
    # only argmax/top-k can take the (B, 128) slab and skip this copy.
    return out[:, :OUT_DIM] if slice_output else out


if __name__ == "__main__":
    key = jax.random.PRNGKey(0)
    kx, kw, kb = jax.random.split(key, 3)

    batch, in_dim = 4, 32
    x = jax.random.normal(kx, (batch, in_dim), jnp.float32)

    # nn.Linear-style init; weight stored pre-transposed as (in_dim, 80).
    bound = 1.0 / jnp.sqrt(jnp.float32(in_dim))
    w_t = jax.random.uniform(kw, (in_dim, OUT_DIM), jnp.float32, -bound, bound)
    b = jax.random.uniform(kb, (OUT_DIM,), jnp.float32, -bound, bound)

    w_pad, b_pad = prepare_params(w_t, b)

    out = gatenet_forward(x, w_pad, b_pad)
    out = jax.block_until_ready(out)
    assert out.shape == (batch, OUT_DIM)

    # Reference with the same bf16 rounding of x and W (tight tolerance).
    xb = x.astype(jnp.bfloat16).astype(jnp.float32)
    wb = w_t.astype(jnp.bfloat16).astype(jnp.float32)
    ref_bf = jax.nn.softmax(xb @ wb + b, axis=1)
    assert jnp.allclose(out, ref_bf, atol=5e-4, rtol=1e-3)

    # Full-f32 reference (loose tolerance covers bf16 input rounding).
    ref_f32 = jax.nn.softmax(x @ w_t + b, axis=1)
    assert jnp.allclose(out, ref_f32, atol=2e-2)

    # Exact normalization: rows are valid probability distributions.
    assert jnp.allclose(jnp.sum(out, axis=1), 1.0, atol=1e-4)

    print("KERNEL_OK")
</pallas_src>

<mosaic_0001>
module attributes {stable_mosaic.version = 11 : i64} {
  func.func @gatenet_kernel(%arg0: i32, %arg1: i32, %arg2: memref<4x32xf32, #tpu.memory_space<vmem>>, %arg3: memref<32x128xbf16, #tpu.memory_space<vmem>>, %arg4: memref<1x128xf32, #tpu.memory_space<vmem>>, %arg5: memref<4x128xf32, #tpu.memory_space<vmem>>) attributes {dimension_semantics = [#tpu.dimension_semantics<parallel>, #tpu.dimension_semantics<arbitrary>], iteration_bounds = array<i64: 1, 1>, scalar_prefetch = 0 : i64, scratch_operands = 0 : i64, tpu.core_type = #tpu.core_type<tc>, window_params = [{transform_indices = @transform_0, window_bounds = array<i64: 4, 32>}, {transform_indices = @transform_1, window_bounds = array<i64: 32, 128>}, {pipeline_mode = #tpu.pipeline_mode<synchronous>, transform_indices = @transform_2, window_bounds = array<i64: 1, 128>}, {transform_indices = @transform_3, window_bounds = array<i64: 4, 128>}]} {
    %c0_i32 = arith.constant 0 : i32
    %0 = arith.cmpi eq, %arg1, %c0_i32 : i32
    %1 = arith.extui %0 : i1 to i32
    %c0_i32_0 = arith.constant 0 : i32
    %2 = arith.cmpi ne, %1, %c0_i32_0 : i32
    scf.if %2 {
      %cst_10 = arith.constant 0.000000e+00 : f32
      %13 = vector.broadcast %cst_10 : f32 to vector<4x128xf32>
      %c0_11 = arith.constant 0 : index
      %c0_12 = arith.constant 0 : index
      %14 = vector.load %arg5[%c0_11, %c0_12] : memref<4x128xf32, #tpu.memory_space<vmem>>, vector<4x128xf32>
      tpu.vector_store %arg5[%c0_11, %c0_12], %13 {strides = array<i32>} : memref<4x128xf32, #tpu.memory_space<vmem>>, vector<4x128xf32>,
    } else {
    }
    %c0 = arith.constant 0 : index
    %c0_1 = arith.constant 0 : index
    %3 = vector.load %arg2[%c0, %c0_1] : memref<4x32xf32, #tpu.memory_space<vmem>>, vector<4x32xf32>
    %c0_2 = arith.constant 0 : index
    %c0_3 = arith.constant 0 : index
    %4 = vector.load %arg3[%c0_2, %c0_3] : memref<32x128xbf16, #tpu.memory_space<vmem>>, vector<32x128xbf16>
    %c0_4 = arith.constant 0 : index
    %c0_5 = arith.constant 0 : index
    %5 = vector.load %arg5[%c0_4, %c0_5] : memref<4x128xf32, #tpu.memory_space<vmem>>, vector<4x128xf32>
    %6 = arith.truncf %3 : vector<4x32xf32> to vector<4x32xbf16>
    %cst = arith.constant dense<0.000000e+00> : vector<4x128xf32>
    %7 = tpu.matmul %6, %4, %cst {dimension_numbers = #tpu.dot_dimension_numbers<[1], [0], [0], [1], [0, 0, 1, 1], [], []>} : vector<4x32xbf16>, vector<32x128xbf16>, vector<4x128xf32> -> vector<4x128xf32>
    %8 = arith.addf %5, %7 : vector<4x128xf32>
    %c0_6 = arith.constant 0 : index
    %c0_7 = arith.constant 0 : index
    %9 = vector.load %arg5[%c0_6, %c0_7] : memref<4x128xf32, #tpu.memory_space<vmem>>, vector<4x128xf32>
    tpu.vector_store %arg5[%c0_6, %c0_7], %8 {strides = array<i32>} : memref<4x128xf32, #tpu.memory_space<vmem>>, vector<4x128xf32>,
    %c0_i32_8 = arith.constant 0 : i32
    %10 = arith.cmpi eq, %arg1, %c0_i32_8 : i32
    %11 = arith.extui %10 : i1 to i32
    %c0_i32_9 = arith.constant 0 : i32
    %12 = arith.cmpi ne, %11, %c0_i32_9 : i32
    scf.if %12 {
      %c0_10 = arith.constant 0 : index
      %c0_11 = arith.constant 0 : index
      %13 = vector.load %arg5[%c0_10, %c0_11] : memref<4x128xf32, #tpu.memory_space<vmem>>, vector<4x128xf32>
      %c0_12 = arith.constant 0 : index
      %c0_13 = arith.constant 0 : index
      %14 = vector.load %arg4[%c0_12, %c0_13] : memref<1x128xf32, #tpu.memory_space<vmem>>, vector<1x128xf32>
      %15 = vector.broadcast %14 : vector<1x128xf32> to vector<4x128xf32>
      %16 = arith.addf %13, %15 : vector<4x128xf32>
      %cst_14 = arith.constant dense<0xFF800000> : vector<4xf32>
      %17 = vector.multi_reduction <maximumf>, %16, %cst_14 [1] : vector<4x128xf32> to vector<4xf32>
      %18 = vector.shape_cast %17 : vector<4xf32> to vector<4x1xf32>
      %19 = vector.broadcast %18 : vector<4x1xf32> to vector<4x128xf32>
      %20 = arith.subf %16, %19 : vector<4x128xf32>
      %21 = math.exp %20 : vector<4x128xf32>
      %cst_15 = arith.constant dense<0.000000e+00> : vector<4xf32>
      %22 = vector.multi_reduction <add>, %21, %cst_15 [1] : vector<4x128xf32> to vector<4xf32>
      %23 = vector.shape_cast %22 : vector<4xf32> to vector<4x1xf32>
      %24 = vector.broadcast %23 : vector<4x1xf32> to vector<4x128xf32>
      %25 = arith.divf %21, %24 : vector<4x128xf32>
      %c0_16 = arith.constant 0 : index
      %c0_17 = arith.constant 0 : index
      %26 = vector.load %arg5[%c0_16, %c0_17] : memref<4x128xf32, #tpu.memory_space<vmem>>, vector<4x128xf32>
      tpu.vector_store %arg5[%c0_16, %c0_17], %25 {strides = array<i32>} : memref<4x128xf32, #tpu.memory_space<vmem>>, vector<4x128xf32>,
    } else {
    }
    return
  }
  func.func @transform_0(%arg0: i32, %arg1: i32) -> (i32, i32) {
    %c0_i32 = arith.constant 0 : i32
    return %arg0, %arg1 : i32, i32
  }
  func.func @transform_1(%arg0: i32, %arg1: i32) -> (i32, i32) {
    %c0_i32 = arith.constant 0 : i32
    %c0_i32_0 = arith.constant 0 : i32
    return %arg1, %c0_i32 : i32, i32
  }
  func.func @transform_2(%arg0: i32, %arg1: i32) -> (i32, i32) {
    %c0_i32 = arith.constant 0 : i32
    %c0_i32_0 = arith.constant 0 : i32
    %c0_i32_1 = arith.constant 0 : i32
    return %c0_i32, %c0_i32_0 : i32, i32
  }
  func.func @transform_3(%arg0: i32, %arg1: i32) -> (i32, i32) {
    %c0_i32 = arith.constant 0 : i32
    %c0_i32_0 = arith.constant 0 : i32
    return %arg0, %c0_i32 : i32, i32
  }
}

</mosaic_0001>

<llo_original>
// kernel: tpu_custom_call.1
$region0: #{tpu_custom_call.1}
  #allocation0 [shape = 'u32[]', space=smem, size = 0x4, offset = 0x4, fixed_abs, tag = 'smem constant byte address 0x4 - core index']
  #allocation1 [shape = 'u32[144,128]{1,0:T(1,128)}', space=vmem, size = 0x12000, scoped, tag = 'internal scratch']
  %s0 = inlined_call_operand.hbm [shape: f32[4,32], index: 0, kind: input, shape index: {}]
  %s1 = inlined_call_operand.hbm [shape: bf16[32,128], index: 1, kind: input, shape index: {}]
  %s2 = inlined_call_operand.vmem [shape: f32[1,128], index: 2, kind: input, shape index: {}]
  %s3 = inlined_call_operand.hbm [shape: f32[4,128], index: 3, kind: output, shape index: {}]
  %s4 = sld [smem:[#allocation0]]
  $region38: #{tpu_custom_call.1} parent=0
    _
  %s6 = ssub.s32 1, %s4
  %s7 = scalar_select 0, %s6, %s4
  $region1: #{tpu_custom_call.1} parent=0
    #allocation2 [shape = 'u8[2048]{0}', space=vmem, size = 0x800, scoped, tag = 'input window, operand 0, single buffered']
    #allocation3 [shape = 's32[1]{0}', space=sflag, size = 0x4, scoped, tag = 'scoped memory for tpu_custom_call.1']
    #allocation4 [shape = 's32[1]{0}', space=sflag, size = 0x4, scoped, tag = 'scoped memory for tpu_custom_call.1']
    #allocation5 [shape = 'u8[8192]{0}', space=vmem, size = 0x2000, scoped, tag = 'input window, operand 1, single buffered']
    #allocation6 [shape = 's32[1]{0}', space=sflag, size = 0x4, scoped, tag = 'scoped memory for tpu_custom_call.1']
    #allocation7 [shape = 'u8[2048]{0}', space=vmem, size = 0x800, scoped, tag = 'output window, operand 0, single buffered']
    %8 = vsyncpa [#allocation3], 0
    %9 = vsyncpa [#allocation6], 0
    %10 = vsyncpa [#allocation4], 0
    // Predicated region
    $region2: #{tpu_custom_call.1} parent=1 // pred_check
      _
    $region3: #{tpu_custom_call.1} parent=1 // pred_check_branch
      %12 = sbr.rel (0) target = $region5
    $region4: #{tpu_custom_call.1} parent=1 // pred_region
      %s14 = ssub.s32 64, 64
      %15 = vsyncadd [#allocation3], %s14
      %s17 = sshll.u32 [#allocation2], 4
      %s18 = int_to_ptr.vmem [resolvable:$true] %s17
      %20 = dma.hbm_to_vmem [thread:$0]  %s0, 64, %s18, [#allocation3]
    $region5: #{tpu_custom_call.1} parent=1 // pred_fallthru
      _
    // Predicated region
    $region6: #{tpu_custom_call.1} parent=1 // pred_check
      _
    $region7: #{tpu_custom_call.1} parent=1 // pred_check_branch
      %22 = sbr.rel (0) target = $region9
    $region8: #{tpu_custom_call.1} parent=1 // pred_region
      %s24 = ssub.s32 256, 256
      %25 = vsyncadd [#allocation6], %s24
      %s26 = sshll.u32 [#allocation5], 4
      %s27 = int_to_ptr.vmem [resolvable:$true] %s26
      %32 = dma.hbm_to_vmem [thread:$0]  %s1, 256, %s27, [#allocation6], 64, 64, 4
    $region9: #{tpu_custom_call.1} parent=1 // pred_fallthru
      _
    // Predicated region
    $region10: #{tpu_custom_call.1} parent=1 // pred_check
      _
    $region11: #{tpu_custom_call.1} parent=1 // pred_check_branch
      %34 = sbr.rel (0) target = $region13
    $region12: #{tpu_custom_call.1} parent=1 // pred_region
      _
    $region13: #{tpu_custom_call.1} parent=1 // pred_fallthru
      _
    // Predicated region
    $region14: #{tpu_custom_call.1} parent=1 // pred_check
      _
    $region15: #{tpu_custom_call.1} parent=1 // pred_check_branch
      %36 = sbr.rel (0) target = $region17
    $region16: #{tpu_custom_call.1} parent=1 // pred_region
      %37 = dma.done [#allocation3], 64
    $region17: #{tpu_custom_call.1} parent=1 // pred_fallthru
      _
    // Predicated region
    $region18: #{tpu_custom_call.1} parent=1 // pred_check
      _
    $region19: #{tpu_custom_call.1} parent=1 // pred_check_branch
      %39 = sbr.rel (0) target = $region21
    $region20: #{tpu_custom_call.1} parent=1 // pred_region
      %40 = dma.done [#allocation6], 256
    $region21: #{tpu_custom_call.1} parent=1 // pred_fallthru
      _
    %p42 = scmp.eq.s32.totalorder 0, 0
    // Predicated region
    $region22: #{tpu_custom_call.1} parent=1 // pred_check
      %p43 = pneg %p42
    $region23: #{tpu_custom_call.1} parent=1 // pred_check_branch
      %45 = sbr.rel (%p43) target = $region25
    $region24: #{tpu_custom_call.1} parent=1 // pred_region
      %46 = vst [vmem:[#allocation7] sm:$0xf] 0.0
    $region25: #{tpu_custom_call.1} parent=1 // pred_fallthru
      _
    %v47 = vld [vmem:[#allocation2] sm:$0xf]
    %v48 = vld [vmem:[#allocation5] sm:$0xf]
    %v49 = vld [vmem:[#allocation5 + $0x4] sm:$0xf]
    %v50 = vld [vmem:[#allocation5 + $0x8] sm:$0xf]
    %v51 = vld [vmem:[#allocation5 + $0xc] sm:$0xf]
    %v52 = vld [vmem:[#allocation7] sm:$0xf]
    %v53 = vpack.c.bf16 %v47, %v47
    %v58 = vunpack.c.l.b16 %v48
    %v59 = vunpack.c.l.b16 %v49
    %v60 = vunpack.c.l.b16 %v50
    %v61 = vunpack.c.l.b16 %v51
    %v62 = vpack.c.b16 %v59, %v58
    %v63 = vpack.c.b16 %v61, %v60
    %vm66 = vcmask 261120
    %v68 = vsel %vm66, %v53, 0
    %70 = vmatprep.subr.bf16.mxu0 0
    %71 = vmatpush1.bf16.msra.mxu0 %v62
    %72 = vmatprep.subr.bf16.mxu0 0
    %73 = vmatpush1.bf16.msra.mxu0 %v63
    %74 = vmatprep.subr.bf16.mxu0 0
    %75 = vmatpush1.bf16.msra.mxu0 0
    %76 = vmatprep.subr.bf16.mxu0 0
    %77 = vmatpush1.bf16.msra.mxu0 0
    %78 = vmatprep.subr.bf16.mxu0 0
    %79 = vmatpush1.bf16.msra.mxu0 0
    %80 = vmatprep.subr.bf16.mxu0 0
    %81 = vmatpush1.bf16.msra.mxu0 0
    %82 = vmatprep.subr.bf16.mxu0 0
    %83 = vmatpush1.bf16.msra.mxu0 0
    %84 = vmatprep.subr.bf16.mxu0 0
    %85 = vmatpush1.bf16.msra.mxu0 0
    %86 = vmatprep.subr.bf16.mxu0 0
    %87 = vmatpush1.bf16.msra.mxu0 0
    %88 = vmatprep.subr.bf16.mxu0 0
    %89 = vmatpush1.bf16.msra.mxu0 0
    %90 = vmatprep.subr.bf16.mxu0 0
    %91 = vmatpush1.bf16.msra.mxu0 0
    %92 = vmatprep.subr.bf16.mxu0 0
    %93 = vmatpush1.bf16.msra.mxu0 0
    %94 = vmatprep.subr.bf16.mxu0 0
    %95 = vmatpush1.bf16.msra.mxu0 0
    %96 = vmatprep.subr.bf16.mxu0 0
    %97 = vmatpush1.bf16.msra.mxu0 0
    %98 = vmatprep.subr.bf16.mxu0 0
    %99 = vmatpush1.bf16.msra.mxu0 0
    %100 = vmatprep.subr.bf16.mxu0 0
    %101 = vmatpush1.bf16.msra.mxu0 0
    %102 = vmatprep.mubr.bf16.mxu0 0
    %103 = vmatmul.mubr.bf16.gmra.mrb[0].mxu0 %v68
    %v104 = vpop.f32.mrb[0].mxu0
    %v105 = vadd.f32 0.0, %v104
    %v106 = vpop.f32.mrb[0].mxu0
    %v107 = vpop.f32.mrb[0].mxu0
    %v108 = vpop.f32.mrb[0].mxu0
    %109 = vdwg.mxu0
    %v110 = vadd.f32 %v52, %v105
    %111 = vst [vmem:[#allocation7] sm:$0xf] %v110
    // Predicated region
    $region26: #{tpu_custom_call.1} parent=1 // pred_check
      %p112 = pneg %p42
    $region27: #{tpu_custom_call.1} parent=1 // pred_check_branch
      %114 = sbr.rel (%p112) target = $region29
    $region28: #{tpu_custom_call.1} parent=1 // pred_region
      %v115 = vld [vmem:[#allocation7] sm:$0xf]
      %v116 = vld [vmem:[%s2] sm:$0x1]
      %v118 = vlaneseq
      %v119 = vshrl.u32 %v118, 7
      %v120 = vsub.s32 0, %v119
      %v121 = vrot.slane %v116, %v120
      %v123 = vadd.f32 %v115, %v121
      %vm124 = vcmask 1043456
      %v125 = vsel %vm124, %v123, -inf
      %126 = vmax.xlane.f32.xlu0 %v125
      %v127 = vpop.xlane.xlu0 %126
      %v128 = vsub.f32 %v123, %v127
      %v129 = vmul.f32 %v128, 1.442695
      %v130 = vpow.pop %v129
      %v131 = vsel %vm124, %v130, 0.0
      %132 = vadd.xlane.f32.xlu0 %v131
      %v133 = vpop.xlane.xlu0 %132
      %v134 = vrcp.pop %v133
      %v135 = vmul.f32 %v130, %v134
      %136 = vst [vmem:[#allocation7] sm:$0xf] %v135
    $region29: #{tpu_custom_call.1} parent=1 // pred_fallthru
      _
    // Predicated region
    $region30: #{tpu_custom_call.1} parent=1 // pred_check
      _
    $region31: #{tpu_custom_call.1} parent=1 // pred_check_branch
      %138 = sbr.rel (0) target = $region33
    $region32: #{tpu_custom_call.1} parent=1 // pred_region
      %s140 = ssub.s32 64, 64
      %141 = vsyncadd [#allocation4], %s140
      %s143 = sshll.u32 [#allocation7], 4
      %s144 = int_to_ptr.vmem [resolvable:$true] %s143
      %146 = dma.vmem_to_hbm [thread:$0]  %s144, 64, %s3, [#allocation4]
    $region33: #{tpu_custom_call.1} parent=1 // pred_fallthru
      _
    // Predicated region
    $region34: #{tpu_custom_call.1} parent=1 // pred_check
      _
    $region35: #{tpu_custom_call.1} parent=1 // pred_check_branch
      %148 = sbr.rel (0) target = $region37
    $region36: #{tpu_custom_call.1} parent=1 // pred_region
      %149 = dma.done [#allocation4], 64
    $region37: #{tpu_custom_call.1} parent=1 // pred_fallthru
      _
    %150 = vsyncpa [#allocation3], 1
    %151 = vsyncpa [#allocation6], 1
    %152 = vsyncpa [#allocation4], 1

</llo_original>
